<compile_context>
chip_gen: v7x
topology: tpu7x:2x2x1
jax: 0.10.0
libtpu: 0.0.40
codegen_flags: <defaults>
</compile_context>

<pallas_src>
import jax
import jax.numpy as jnp
from jax.experimental import pallas as pl
from jax.experimental.pallas import tpu as pltpu

_LANE = 128
_MIN_COPY_BYTES = 512 * 1024            # below this, a kernel launch is pure overhead
_BLOCK_BYTES = 8 * 1024 * 1024          # ~8 MiB per block buffer
_VMEM_LIMIT_BYTES = 48 * 1024 * 1024    # 4 double-buffered in+out blocks + headroom,
                                        # under v7x's 64 MiB physical VMEM


def _copy_kernel(x_ref, o_ref):
    # Pure pass-through: the abstract BaseModel defines no computation.
    o_ref[...] = x_ref[...]


def _sublane_packing(dtype):
    """Rows per sublane group for this dtype (8 f32 / 16 bf16 / 32 int8)."""
    return {4: 8, 2: 16, 1: 32}.get(jnp.dtype(dtype).itemsize, 8)


def _lane_dense_slab(total, sub):
    """Factor `total` elements into (rows, cols), cols a large multiple of 128.

    Prefers a factorization with rows >= one sublane group so vregs are fully
    populated; falls back to any 128-multiple column count.
    """
    candidates = (2048, 1024, 512, 256, _LANE)
    for cols in candidates:
        if total % cols == 0 and total // cols >= sub:
            return total // cols, cols
    for cols in candidates:
        if total % cols == 0:
            return total // cols, cols
    return None


def _identity_copy(x, *, min_bytes=_MIN_COPY_BYTES):
    """Opt-in Pallas identity copy (fresh HBM buffer). NOT used by forward()."""
    itemsize = jnp.dtype(x.dtype).itemsize
    total = x.size

    # Small payloads or shapes that don't factor into a lane-dense slab:
    # the kernel launch would be pure overhead — pass through.
    if total * itemsize < min_bytes:
        return x
    sub = _sublane_packing(x.dtype)
    slab = _lane_dense_slab(total, sub)
    if slab is None:
        # TODO(synk): if real compute is ever added, pad cols to a multiple of
        #             128 and mask instead of silently skipping the kernel.
        return x

    rows, cols = slab
    x2d = x.reshape(rows, cols)

    # Row-tile sized to ~_BLOCK_BYTES, aligned to the dtype's sublane packing.
    cap = max(sub, (_BLOCK_BYTES // (cols * itemsize)) // sub * sub)
    tile_r = min(cap, rows)
    # Keep >= 2 tiles when possible so v7x's two TensorCores both get work.
    if rows > sub and pl.cdiv(rows, tile_r) < 2:
        half = pl.cdiv(rows, 2)
        tile_r = max(sub, ((half + sub - 1) // sub) * sub)
    grid = (pl.cdiv(rows, tile_r),)

    y2d = pl.pallas_call(
        _copy_kernel,
        out_shape=jax.ShapeDtypeStruct((rows, cols), x2d.dtype),
        grid_spec=pltpu.PrefetchScalarGridSpec(
            num_scalar_prefetch=0,
            grid=grid,
            in_specs=[pl.BlockSpec((tile_r, cols), lambda i: (i, 0))],
            out_specs=pl.BlockSpec((tile_r, cols), lambda i: (i, 0)),
        ),
        compiler_params=pltpu.CompilerParams(
            # Independent row tiles: shard across both TensorCores on v7x.
            dimension_semantics=("parallel",),
            vmem_limit_bytes=_VMEM_LIMIT_BYTES,
        ),
        # Purely memory-bound: read + write of the whole array, zero flops.
        cost_estimate=pl.CostEstimate(
            flops=0, transcendentals=0, bytes_accessed=2 * total * itemsize
        ),
    )(x2d)

    return y2d.reshape(x.shape)


def materialize_copy(x):
    """Explicitly materialize a fresh copy of `x` via the Pallas identity kernel."""
    return _identity_copy(x, min_bytes=0)


def base_model_forward(**batch):
    """Pallas 'forward' for BaseModel.

    Mirrors the PyTorch signature `forward(self, **batch)`.  The base class
    defines no semantics, so the forward pass is an unconditional
    pass-through: every array is returned unchanged with no kernel launch and
    no extra HBM traffic (the review's dominant optimization on all of
    v5e / v6e / v7x).
    """
    return dict(batch)


if __name__ == "__main__":
    key = jax.random.PRNGKey(0)
    kx, kl = jax.random.split(key)

    # Small NCHW input consistent with a typical vision batch fed to a
    # BaseModel subclass: batch=2, channels=4, spatial=16x16.
    x = jax.random.normal(kx, (2, 4, 16, 16), dtype=jnp.float32)
    # Tiny per-example labels.
    labels = jax.random.randint(kl, (2,), 0, 10, dtype=jnp.int32)

    # 1) Forward pass: pure pass-through (no kernel launch).
    result = base_model_forward(x=x, labels=labels)
    y = jax.block_until_ready(result["x"])
    lbl = jax.block_until_ready(result["labels"])
    assert y.shape == x.shape and y.dtype == x.dtype
    assert bool(jnp.allclose(y, x))
    assert lbl.shape == labels.shape and lbl.dtype == labels.dtype
    assert bool(jnp.all(lbl == labels))

    # 2) Exercise the opt-in Pallas identity kernel once on TPU (lane-dense
    #    (8, 256) slab for this 2048-element input) and verify exactness.
    y_copy = jax.block_until_ready(materialize_copy(x))
    assert y_copy.shape == x.shape and y_copy.dtype == x.dtype
    assert bool(jnp.array_equal(y_copy, x))

    print("KERNEL_OK")
</pallas_src>

<mosaic_0001>
module attributes {stable_mosaic.version = 11 : i64} {
  func.func @_copy_kernel(%arg0: i32, %arg1: memref<8x256xf32, #tpu.memory_space<vmem>>, %arg2: memref<8x256xf32, #tpu.memory_space<vmem>>) attributes {dimension_semantics = [#tpu.dimension_semantics<parallel>], iteration_bounds = array<i64: 1>, scalar_prefetch = 0 : i64, scratch_operands = 0 : i64, tpu.core_type = #tpu.core_type<tc>, window_params = [{transform_indices = @transform_0, window_bounds = array<i64: 8, 256>}, {transform_indices = @transform_1, window_bounds = array<i64: 8, 256>}]} {
    %c0 = arith.constant 0 : index
    %c0_0 = arith.constant 0 : index
    %0 = vector.load %arg1[%c0, %c0_0] : memref<8x256xf32, #tpu.memory_space<vmem>>, vector<8x256xf32>
    %c0_1 = arith.constant 0 : index
    %c0_2 = arith.constant 0 : index
    %1 = vector.load %arg2[%c0_1, %c0_2] : memref<8x256xf32, #tpu.memory_space<vmem>>, vector<8x256xf32>
    tpu.vector_store %arg2[%c0_1, %c0_2], %0 {strides = array<i32>} : memref<8x256xf32, #tpu.memory_space<vmem>>, vector<8x256xf32>,
    return
  }
  func.func @transform_0(%arg0: i32) -> (i32, i32) {
    %c0_i32 = arith.constant 0 : i32
    %c0_i32_0 = arith.constant 0 : i32
    return %arg0, %c0_i32 : i32, i32
  }
  func.func @transform_1(%arg0: i32) -> (i32, i32) {
    %c0_i32 = arith.constant 0 : i32
    %c0_i32_0 = arith.constant 0 : i32
    return %arg0, %c0_i32 : i32, i32
  }
}

</mosaic_0001>

<llo_original>
// kernel: tpu_custom_call.1
$region0: #{tpu_custom_call.1}
  #allocation0 [shape = 'u32[]', space=smem, size = 0x4, offset = 0x4, fixed_abs, tag = 'smem constant byte address 0x4 - core index']
  #allocation1 [shape = 'u32[144,128]{1,0:T(1,128)}', space=vmem, size = 0x12000, scoped, tag = 'internal scratch']
  %s0 = inlined_call_operand.hbm [shape: f32[8,256], index: 0, kind: input, shape index: {}]
  %s1 = inlined_call_operand.hbm [shape: f32[8,256], index: 1, kind: output, shape index: {}]
  %s2 = sld [smem:[#allocation0]]
  $region18: #{tpu_custom_call.1} parent=0
    _
  %s4 = ssub.s32 1, %s2
  %s5 = scalar_select 0, %s4, %s2
  $region1: #{tpu_custom_call.1} parent=0
    #allocation2 [shape = 'u8[8192]{0}', space=vmem, size = 0x2000, scoped, tag = 'input window, operand 0, single buffered']
    #allocation3 [shape = 's32[1]{0}', space=sflag, size = 0x4, scoped, tag = 'scoped memory for tpu_custom_call.1']
    #allocation4 [shape = 's32[1]{0}', space=sflag, size = 0x4, scoped, tag = 'scoped memory for tpu_custom_call.1']
    #allocation5 [shape = 'u8[8192]{0}', space=vmem, size = 0x2000, scoped, tag = 'output window, operand 0, single buffered']
    %6 = vsyncpa [#allocation3], 0
    %7 = vsyncpa [#allocation4], 0
    // Predicated region
    $region2: #{tpu_custom_call.1} parent=1 // pred_check
      _
    $region3: #{tpu_custom_call.1} parent=1 // pred_check_branch
      %9 = sbr.rel (0) target = $region5
    $region4: #{tpu_custom_call.1} parent=1 // pred_region
      %s11 = ssub.s32 256, 256
      %12 = vsyncadd [#allocation3], %s11
      %s14 = sshll.u32 [#allocation2], 4
      %s15 = int_to_ptr.vmem [resolvable:$true] %s14
      %17 = dma.hbm_to_vmem [thread:$0]  %s0, 256, %s15, [#allocation3]
    $region5: #{tpu_custom_call.1} parent=1 // pred_fallthru
      _
    // Predicated region
    $region6: #{tpu_custom_call.1} parent=1 // pred_check
      _
    $region7: #{tpu_custom_call.1} parent=1 // pred_check_branch
      %19 = sbr.rel (0) target = $region9
    $region8: #{tpu_custom_call.1} parent=1 // pred_region
      %20 = dma.done [#allocation3], 256
    $region9: #{tpu_custom_call.1} parent=1 // pred_fallthru
      _
    %v21 = vld [vmem:[#allocation2] sm:$0xff]
    %v22 = vld [vmem:[#allocation2 + $0x8] sm:$0xff]
    %23 = vst [vmem:[#allocation5] sm:$0xff] %v21
    %24 = vst [vmem:[#allocation5 + $0x8] sm:$0xff] %v22
    // Predicated region
    $region10: #{tpu_custom_call.1} parent=1 // pred_check
      _
    $region11: #{tpu_custom_call.1} parent=1 // pred_check_branch
      %26 = sbr.rel (0) target = $region13
    $region12: #{tpu_custom_call.1} parent=1 // pred_region
      %s28 = ssub.s32 256, 256
      %29 = vsyncadd [#allocation4], %s28
      %s31 = sshll.u32 [#allocation5], 4
      %s32 = int_to_ptr.vmem [resolvable:$true] %s31
      %34 = dma.vmem_to_hbm [thread:$0]  %s32, 256, %s1, [#allocation4]
    $region13: #{tpu_custom_call.1} parent=1 // pred_fallthru
      _
    // Predicated region
    $region14: #{tpu_custom_call.1} parent=1 // pred_check
      _
    $region15: #{tpu_custom_call.1} parent=1 // pred_check_branch
      %36 = sbr.rel (0) target = $region17
    $region16: #{tpu_custom_call.1} parent=1 // pred_region
      %37 = dma.done [#allocation4], 256
    $region17: #{tpu_custom_call.1} parent=1 // pred_fallthru
      _
    %38 = vsyncpa [#allocation3], 1
    %39 = vsyncpa [#allocation4], 1

</llo_original>
